<compile_context>
chip_gen: v5e
topology: v5e:2x2
jax: 0.10.0
libtpu: 0.0.40
codegen_flags: <defaults>
</compile_context>

<pallas_src>
import functools

import jax
import jax.numpy as jnp
from jax import lax
from jax.experimental import pallas as pl
from jax.experimental.pallas import tpu as pltpu

N_EMBD = 128
NUM_DIGITS = 10
MAX_LEN = NUM_DIGITS * 2 + (NUM_DIGITS + 1)  # 31; registered tril buffer is (30, 30)


def _head_kernel(x_ref, w_ref, o_ref, *, bc, T, H, dense_out):
    # x_ref: (bc*T, C)   w_ref: (3, C, H)   o_ref: (bc, T*H) or (bc, T, H)
    C = x_ref.shape[-1]
    x2 = x_ref[...]                                              # (bc*T, C) f32

    # Three lane-aligned projections from the stacked weight; each is a single
    # 2-D MXU contraction with M = bc*T rows (no unaligned 32/64-lane slices).
    q = jnp.dot(x2, w_ref[0], preferred_element_type=jnp.float32)
    k = jnp.dot(x2, w_ref[1], preferred_element_type=jnp.float32)
    v = jnp.dot(x2, w_ref[2], preferred_element_type=jnp.float32)
    # T is padded to a multiple of 8 by the wrapper, so these splits of the
    # sublane dim are layout-free.
    q = q.reshape(bc, T, H)
    k = k.reshape(bc, T, H)
    v = v.reshape(bc, T, H)

    # Scores: batched contraction over the head dim (no explicit k transpose).
    # Scale is C**-0.5 (C = n_embd), mirroring the PyTorch source exactly.
    scale = jnp.float32(C ** -0.5)
    wei = jnp.einsum('btd,bsd->bts', q, k,
                     preferred_element_type=jnp.float32) * scale  # (bc, T, T)

    # Causal mask == tril[:T, :T].  Finite sentinel (not -inf): safe because
    # the diagonal is never masked, so no row is ever fully masked.  If this
    # kernel is reused with an arbitrary mask that can mask a full row, the
    # result becomes uniform instead of NaN -- documented assumption.
    row = lax.broadcasted_iota(jnp.int32, (bc, T, T), 1)
    col = lax.broadcasted_iota(jnp.int32, (bc, T, T), 2)
    neg = jnp.finfo(jnp.float32).min
    wei = jnp.where(col <= row, wei, neg)

    # Exact f32 softmax along the key axis (exact reciprocal for parity with
    # the PyTorch eval output; costs nothing measurable at this size).
    m = jnp.max(wei, axis=-1, keepdims=True)
    e = jnp.exp(wei - m)
    p = e / jnp.sum(e, axis=-1, keepdims=True)

    # TODO(synk): attn_dropout is identity here (eval mode); a training-mode
    # kernel would draw a mask via pltpu.prng_seed / pltpu.prng_random_bits.

    out = jnp.einsum('bts,bsd->btd', p, v,
                     preferred_element_type=jnp.float32)          # (bc, T, H)

    if dense_out:
        # Lane-dense writeback: o_ref is (bc, T*H), so the HBM store DMA is a
        # wide unmasked transfer instead of 32-lane masked partial stores.
        # The staging stores below are static lane slices (cheap, in-VMEM).
        for t in range(T):
            o_ref[:, t * H:(t + 1) * H] = out[:, t, :].astype(o_ref.dtype)
    else:
        o_ref[...] = out.astype(o_ref.dtype)


def fuse_head_weights(wq, wk, wv):
    """Stack the three (C, H) projection weights once at init time.

    Hoists the per-forward weight concat out of the hot path and keeps every
    in-kernel slice of the weight tile-aligned.
    """
    return jnp.stack([wq, wk, wv], axis=0)      # (3, C, H)


def _pick_grid(B, T_pad):
    """Single grid step unless the batch is large; chunks stay 8-aligned."""
    rows = B * T_pad
    if rows < 4096:
        return 1
    for g in (8, 4, 2):
        if B % g == 0 and (B // g) % 8 == 0 and (B // g) * T_pad >= 2048:
            return g
    return 1


def head_forward(x, w_stacked):
    """x: (B, T, C) f32; w_stacked: (3, C, H) f32 (from fuse_head_weights).

    Returns (B, T, H) f32.  Weights are stored as (C, H) so the projection is
    x @ W, matching nn.Linear(x) = x @ W_torch.T.
    """
    B, T, C = x.shape
    H = w_stacked.shape[-1]
    assert T <= MAX_LEN - 1, "sequence length exceeds registered tril buffer"

    # Pad T up to a multiple of 8 so all in-kernel reshapes are sublane-clean.
    # Padded query rows are sliced off; padded key columns are behind the
    # causal mask for every real query row, so results are unaffected.
    T_pad = -(-T // 8) * 8
    if T_pad != T:
        x = jnp.pad(x, ((0, 0), (0, T_pad - T), (0, 0)))

    x2d = x.reshape(B * T_pad, C)               # free: contiguous row-major

    G = _pick_grid(B, T_pad)
    bc = B // G
    dense = (T_pad * H) % 128 == 0

    kernel = functools.partial(_head_kernel, bc=bc, T=T_pad, H=H,
                               dense_out=dense)

    if dense:
        out_shape = jax.ShapeDtypeStruct((B, T_pad * H), jnp.float32)
        out_spec = pl.BlockSpec((bc, T_pad * H), lambda g: (g, 0))
    else:
        out_shape = jax.ShapeDtypeStruct((B, T_pad, H), jnp.float32)
        out_spec = pl.BlockSpec((bc, T_pad, H), lambda g: (g, 0, 0))

    out = pl.pallas_call(
        kernel,
        out_shape=out_shape,
        grid_spec=pltpu.PrefetchScalarGridSpec(
            num_scalar_prefetch=0,
            grid=(G,),
            in_specs=[
                pl.BlockSpec((bc * T_pad, C), lambda g: (g, 0)),
                pl.BlockSpec((3, C, H), lambda g: (0, 0, 0)),
            ],
            out_specs=out_spec,
        ),
        compiler_params=pltpu.CompilerParams(
            dimension_semantics=("arbitrary",) if G == 1 else ("parallel",)),
    )(x2d, w_stacked)

    out = out.reshape(B, T_pad, H)
    if T_pad != T:
        out = out[:, :T, :]
    return out


def reference_forward(x, wq, wk, wv):
    """Pure-JAX reference mirroring the PyTorch forward (eval mode)."""
    B, T, C = x.shape
    hp = lax.Precision.HIGHEST
    q = jnp.dot(x, wq, precision=hp)
    k = jnp.dot(x, wk, precision=hp)
    v = jnp.dot(x, wv, precision=hp)
    wei = jnp.einsum('btd,bsd->bts', q, k, precision=hp) * (C ** -0.5)
    mask = jnp.tril(jnp.ones((T, T), dtype=bool))
    wei = jnp.where(mask[None], wei, -jnp.inf)
    wei = jax.nn.softmax(wei, axis=-1)
    return jnp.einsum('bts,bsd->btd', wei, v, precision=hp)


if __name__ == "__main__":
    key = jax.random.PRNGKey(0)
    B, T, C = 2, 8, N_EMBD          # seq = 8 <= max_len - 1 = 30
    head_size = 32

    k_x, k_q, k_k, k_v = jax.random.split(key, 4)
    x = jax.random.normal(k_x, (B, T, C), dtype=jnp.float32)

    # Deterministic nn.Linear-style init: U(-1/sqrt(fan_in), 1/sqrt(fan_in)),
    # stored as (C, head_size) so forward is x @ W (== x @ W_torch.T).
    bound = 1.0 / (C ** 0.5)
    wq = jax.random.uniform(k_q, (C, head_size), jnp.float32, -bound, bound)
    wk = jax.random.uniform(k_k, (C, head_size), jnp.float32, -bound, bound)
    wv = jax.random.uniform(k_v, (C, head_size), jnp.float32, -bound, bound)

    # Hoisted out of the per-forward path (done once at "init").
    w_stacked = fuse_head_weights(wq, wk, wv)

    out = head_forward(x, w_stacked)
    out = jax.block_until_ready(out)

    ref = reference_forward(x, wq, wk, wv)
    assert out.shape == (B, T, head_size)
    assert jnp.allclose(out, ref, atol=1e-3, rtol=1e-3), "mismatch vs reference"

    print("KERNEL_OK")
</pallas_src>

<mosaic_0001>
module attributes {stable_mosaic.version = 11 : i64} {
  func.func @_head_kernel(%arg0: i32, %arg1: memref<16x128xf32, #tpu.memory_space<vmem>>, %arg2: memref<3x128x32xf32, #tpu.memory_space<vmem>>, %arg3: memref<2x256xf32, #tpu.memory_space<vmem>>) attributes {dimension_semantics = [#tpu.dimension_semantics<arbitrary>], iteration_bounds = array<i64: 1>, scalar_prefetch = 0 : i64, scratch_operands = 0 : i64, tpu.core_type = #tpu.core_type<tc>, window_params = [{transform_indices = @transform_0, window_bounds = array<i64: 16, 128>}, {pipeline_mode = #tpu.pipeline_mode<synchronous>, transform_indices = @transform_1, window_bounds = array<i64: 3, 128, 32>}, {transform_indices = @transform_2, window_bounds = array<i64: 2, 256>}]} {
    %c0 = arith.constant 0 : index
    %c0_0 = arith.constant 0 : index
    %0 = vector.load %arg1[%c0, %c0_0] : memref<16x128xf32, #tpu.memory_space<vmem>>, vector<16x128xf32>
    %c0_1 = arith.constant 0 : index
    %c0_2 = arith.constant 0 : index
    %c0_3 = arith.constant 0 : index
    %1 = vector.load %arg2[%c0_1, %c0_2, %c0_3] : memref<3x128x32xf32, #tpu.memory_space<vmem>>, vector<1x128x32xf32>
    %2 = vector.shape_cast %1 : vector<1x128x32xf32> to vector<128x32xf32>
    %cst = arith.constant dense<0.000000e+00> : vector<16x32xf32>
    %3 = tpu.matmul %0, %2, %cst {dimension_numbers = #tpu.dot_dimension_numbers<[1], [0], [0], [1], [0, 0, 1, 1], [], []>} : vector<16x128xf32>, vector<128x32xf32>, vector<16x32xf32> -> vector<16x32xf32>
    %c1 = arith.constant 1 : index
    %c0_4 = arith.constant 0 : index
    %c0_5 = arith.constant 0 : index
    %4 = vector.load %arg2[%c1, %c0_4, %c0_5] : memref<3x128x32xf32, #tpu.memory_space<vmem>>, vector<1x128x32xf32>
    %5 = vector.shape_cast %4 : vector<1x128x32xf32> to vector<128x32xf32>
    %cst_6 = arith.constant dense<0.000000e+00> : vector<16x32xf32>
    %6 = tpu.matmul %0, %5, %cst_6 {dimension_numbers = #tpu.dot_dimension_numbers<[1], [0], [0], [1], [0, 0, 1, 1], [], []>} : vector<16x128xf32>, vector<128x32xf32>, vector<16x32xf32> -> vector<16x32xf32>
    %c2 = arith.constant 2 : index
    %c0_7 = arith.constant 0 : index
    %c0_8 = arith.constant 0 : index
    %7 = vector.load %arg2[%c2, %c0_7, %c0_8] : memref<3x128x32xf32, #tpu.memory_space<vmem>>, vector<1x128x32xf32>
    %8 = vector.shape_cast %7 : vector<1x128x32xf32> to vector<128x32xf32>
    %cst_9 = arith.constant dense<0.000000e+00> : vector<16x32xf32>
    %9 = tpu.matmul %0, %8, %cst_9 {dimension_numbers = #tpu.dot_dimension_numbers<[1], [0], [0], [1], [0, 0, 1, 1], [], []>} : vector<16x128xf32>, vector<128x32xf32>, vector<16x32xf32> -> vector<16x32xf32>
    %10 = vector.shape_cast %3 : vector<16x32xf32> to vector<2x8x32xf32>
    %11 = vector.shape_cast %6 : vector<16x32xf32> to vector<2x8x32xf32>
    %12 = vector.shape_cast %9 : vector<16x32xf32> to vector<2x8x32xf32>
    "tpu.trace_start"() <{level = 10 : i32, message = "btd,bsd->bts"}> : () -> ()
    %cst_10 = arith.constant dense<0.000000e+00> : vector<2x8x8xf32>
    %13 = tpu.matmul %10, %11, %cst_10 {dimension_numbers = #tpu.dot_dimension_numbers<[2], [2], [1], [1], [0, 0, 0, 1, 1, 1], [0], [0]>} : vector<2x8x32xf32>, vector<2x8x32xf32>, vector<2x8x8xf32> -> vector<2x8x8xf32>
    "tpu.trace_stop"() : () -> ()
    %cst_11 = arith.constant 0.0883883461 : f32
    %14 = vector.broadcast %cst_11 : f32 to vector<2x8x8xf32>
    %15 = arith.mulf %13, %14 : vector<2x8x8xf32>
    %16 = tpu.iota {dimensions = array<i32: 1>} : vector<2x8x8xi32>
    %17 = tpu.iota {dimensions = array<i32: 2>} : vector<2x8x8xi32>
    %18 = arith.cmpi sle, %17, %16 : vector<2x8x8xi32>
    %cst_12 = arith.constant -3.40282347E+38 : f32
    %19 = vector.broadcast %cst_12 : f32 to vector<2x8x8xf32>
    %20 = arith.select %18, %15, %19 : vector<2x8x8xi1>, vector<2x8x8xf32>
    %cst_13 = arith.constant dense<0xFF800000> : vector<2x8xf32>
    %21 = vector.multi_reduction <maximumf>, %20, %cst_13 [2] : vector<2x8x8xf32> to vector<2x8xf32>
    %22 = vector.shape_cast %21 : vector<2x8xf32> to vector<2x8x1xf32>
    %23 = vector.broadcast %22 : vector<2x8x1xf32> to vector<2x8x8xf32>
    %24 = arith.subf %20, %23 : vector<2x8x8xf32>
    %25 = math.exp %24 : vector<2x8x8xf32>
    %cst_14 = arith.constant dense<0.000000e+00> : vector<2x8xf32>
    %26 = vector.multi_reduction <add>, %25, %cst_14 [2] : vector<2x8x8xf32> to vector<2x8xf32>
    %27 = vector.shape_cast %26 : vector<2x8xf32> to vector<2x8x1xf32>
    %28 = vector.broadcast %27 : vector<2x8x1xf32> to vector<2x8x8xf32>
    %29 = arith.divf %25, %28 : vector<2x8x8xf32>
    "tpu.trace_start"() <{level = 10 : i32, message = "bts,bsd->btd"}> : () -> ()
    %cst_15 = arith.constant dense<0.000000e+00> : vector<2x8x32xf32>
    %30 = tpu.matmul %29, %12, %cst_15 {dimension_numbers = #tpu.dot_dimension_numbers<[2], [1], [1], [2], [0, 0, 0, 1, 1, 2], [0], [0]>} : vector<2x8x8xf32>, vector<2x8x32xf32>, vector<2x8x32xf32> -> vector<2x8x32xf32>
    "tpu.trace_stop"() : () -> ()
    %31 = vector.extract_strided_slice %30 {offsets = [0, 0, 0], sizes = [2, 1, 32], strides = [1, 1, 1]} : vector<2x8x32xf32> to vector<2x1x32xf32>
    %32 = vector.shape_cast %31 : vector<2x1x32xf32> to vector<2x32xf32>
    %c0_16 = arith.constant 0 : index
    %c0_17 = arith.constant 0 : index
    %33 = vector.load %arg3[%c0_16, %c0_17] : memref<2x256xf32, #tpu.memory_space<vmem>>, vector<2x32xf32>
    tpu.vector_store %arg3[%c0_16, %c0_17], %32 {strides = array<i32>} : memref<2x256xf32, #tpu.memory_space<vmem>>, vector<2x32xf32>,
    %34 = vector.extract_strided_slice %30 {offsets = [0, 1, 0], sizes = [2, 1, 32], strides = [1, 1, 1]} : vector<2x8x32xf32> to vector<2x1x32xf32>
    %35 = vector.shape_cast %34 : vector<2x1x32xf32> to vector<2x32xf32>
    %c0_18 = arith.constant 0 : index
    %c32 = arith.constant 32 : index
    %36 = vector.load %arg3[%c0_18, %c32] : memref<2x256xf32, #tpu.memory_space<vmem>>, vector<2x32xf32>
    tpu.vector_store %arg3[%c0_18, %c32], %35 {strides = array<i32>} : memref<2x256xf32, #tpu.memory_space<vmem>>, vector<2x32xf32>,
    %37 = vector.extract_strided_slice %30 {offsets = [0, 2, 0], sizes = [2, 1, 32], strides = [1, 1, 1]} : vector<2x8x32xf32> to vector<2x1x32xf32>
    %38 = vector.shape_cast %37 : vector<2x1x32xf32> to vector<2x32xf32>
    %c0_19 = arith.constant 0 : index
    %c64 = arith.constant 64 : index
    %39 = vector.load %arg3[%c0_19, %c64] : memref<2x256xf32, #tpu.memory_space<vmem>>, vector<2x32xf32>
    tpu.vector_store %arg3[%c0_19, %c64], %38 {strides = array<i32>} : memref<2x256xf32, #tpu.memory_space<vmem>>, vector<2x32xf32>,
    %40 = vector.extract_strided_slice %30 {offsets = [0, 3, 0], sizes = [2, 1, 32], strides = [1, 1, 1]} : vector<2x8x32xf32> to vector<2x1x32xf32>
    %41 = vector.shape_cast %40 : vector<2x1x32xf32> to vector<2x32xf32>
    %c0_20 = arith.constant 0 : index
    %c96 = arith.constant 96 : index
    %42 = vector.load %arg3[%c0_20, %c96] : memref<2x256xf32, #tpu.memory_space<vmem>>, vector<2x32xf32>
    tpu.vector_store %arg3[%c0_20, %c96], %41 {strides = array<i32>} : memref<2x256xf32, #tpu.memory_space<vmem>>, vector<2x32xf32>,
    %43 = vector.extract_strided_slice %30 {offsets = [0, 4, 0], sizes = [2, 1, 32], strides = [1, 1, 1]} : vector<2x8x32xf32> to vector<2x1x32xf32>
    %44 = vector.shape_cast %43 : vector<2x1x32xf32> to vector<2x32xf32>
    %c0_21 = arith.constant 0 : index
    %c128 = arith.constant 128 : index
    %45 = vector.load %arg3[%c0_21, %c128] : memref<2x256xf32, #tpu.memory_space<vmem>>, vector<2x32xf32>
    tpu.vector_store %arg3[%c0_21, %c128], %44 {strides = array<i32>} : memref<2x256xf32, #tpu.memory_space<vmem>>, vector<2x32xf32>,
    %46 = vector.extract_strided_slice %30 {offsets = [0, 5, 0], sizes = [2, 1, 32], strides = [1, 1, 1]} : vector<2x8x32xf32> to vector<2x1x32xf32>
    %47 = vector.shape_cast %46 : vector<2x1x32xf32> to vector<2x32xf32>
    %c0_22 = arith.constant 0 : index
    %c160 = arith.constant 160 : index
    %48 = vector.load %arg3[%c0_22, %c160] : memref<2x256xf32, #tpu.memory_space<vmem>>, vector<2x32xf32>
    tpu.vector_store %arg3[%c0_22, %c160], %47 {strides = array<i32>} : memref<2x256xf32, #tpu.memory_space<vmem>>, vector<2x32xf32>,
    %49 = vector.extract_strided_slice %30 {offsets = [0, 6, 0], sizes = [2, 1, 32], strides = [1, 1, 1]} : vector<2x8x32xf32> to vector<2x1x32xf32>
    %50 = vector.shape_cast %49 : vector<2x1x32xf32> to vector<2x32xf32>
    %c0_23 = arith.constant 0 : index
    %c192 = arith.constant 192 : index
    %51 = vector.load %arg3[%c0_23, %c192] : memref<2x256xf32, #tpu.memory_space<vmem>>, vector<2x32xf32>
    tpu.vector_store %arg3[%c0_23, %c192], %50 {strides = array<i32>} : memref<2x256xf32, #tpu.memory_space<vmem>>, vector<2x32xf32>,
    %52 = vector.extract_strided_slice %30 {offsets = [0, 7, 0], sizes = [2, 1, 32], strides = [1, 1, 1]} : vector<2x8x32xf32> to vector<2x1x32xf32>
    %53 = vector.shape_cast %52 : vector<2x1x32xf32> to vector<2x32xf32>
    %c0_24 = arith.constant 0 : index
    %c224 = arith.constant 224 : index
    %54 = vector.load %arg3[%c0_24, %c224] : memref<2x256xf32, #tpu.memory_space<vmem>>, vector<2x32xf32>
    tpu.vector_store %arg3[%c0_24, %c224], %53 {strides = array<i32>} : memref<2x256xf32, #tpu.memory_space<vmem>>, vector<2x32xf32>,
    return
  }
  func.func @transform_0(%arg0: i32) -> (i32, i32) {
    %c0_i32 = arith.constant 0 : i32
    %c0_i32_0 = arith.constant 0 : i32
    return %arg0, %c0_i32 : i32, i32
  }
  func.func @transform_1(%arg0: i32) -> (i32, i32, i32) {
    %c0_i32 = arith.constant 0 : i32
    %c0_i32_0 = arith.constant 0 : i32
    %c0_i32_1 = arith.constant 0 : i32
    %c0_i32_2 = arith.constant 0 : i32
    return %c0_i32, %c0_i32_0, %c0_i32_1 : i32, i32, i32
  }
  func.func @transform_2(%arg0: i32) -> (i32, i32) {
    %c0_i32 = arith.constant 0 : i32
    %c0_i32_0 = arith.constant 0 : i32
    return %arg0, %c0_i32 : i32, i32
  }
}

</mosaic_0001>

<llo_original>
// kernel: tpu_custom_call.1
$region0: #{tpu_custom_call.1}
  #allocation0 [shape = 'u32[]', space=smem, size = 0x4, offset = 0x4, fixed_abs, tag = 'smem constant byte address 0x4 - core index']
  #allocation1 [shape = 'u32[72,128]{1,0:T(1,128)}', space=vmem, size = 0x9000, scoped, tag = 'internal scratch']
  %s0 = inlined_call_operand.vmem [shape: f32[16,128], index: 0, kind: input, shape index: {}]
  %s1 = inlined_call_operand.vmem [shape: f32[3,128,32], index: 1, kind: input, shape index: {}]
  %s2 = inlined_call_operand.hbm [shape: f32[2,256], index: 2, kind: output, shape index: {}]
  %s3 = sld [smem:[#allocation0]]
  $region18: #{tpu_custom_call.1} parent=0
    _
  %s5 = ssub.s32 1, %s3
  %s6 = scalar_select 0, %s5, %s3
  $region1: #{tpu_custom_call.1} parent=0
    #allocation2 [shape = 'u8[2048]{0}', space=vmem, size = 0x800, scoped, tag = 'output window, operand 0, single buffered']
    #allocation3 [shape = 's32[1]{0}', space=sflag, size = 0x4, scoped, tag = 'scoped memory for tpu_custom_call.1']
    %7 = vsyncpa [#allocation3], 0
    // Predicated region
    $region2: #{tpu_custom_call.1} parent=1 // pred_check
      _
    $region3: #{tpu_custom_call.1} parent=1 // pred_check_branch
      %9 = sbr.rel (0) target = $region5
    $region4: #{tpu_custom_call.1} parent=1 // pred_region
      _
    $region5: #{tpu_custom_call.1} parent=1 // pred_fallthru
      _
    // Predicated region
    $region6: #{tpu_custom_call.1} parent=1 // pred_check
      _
    $region7: #{tpu_custom_call.1} parent=1 // pred_check_branch
      %11 = sbr.rel (0) target = $region9
    $region8: #{tpu_custom_call.1} parent=1 // pred_region
      _
    $region9: #{tpu_custom_call.1} parent=1 // pred_fallthru
      _
    %v12 = vld [vmem:[%s0] sm:$0xff]
    %v13 = vld [vmem:[%s0 + $0x8] sm:$0xff]
    %v14 = vld [vmem:[%s1] sm:$0xff]
    %v15 = vld [vmem:[%s1 + $0x8] sm:$0xff]
    %v16 = vld [vmem:[%s1 + $0x10] sm:$0xff]
    %v17 = vld [vmem:[%s1 + $0x18] sm:$0xff]
    %v18 = vld [vmem:[%s1 + $0x20] sm:$0xff]
    %v19 = vld [vmem:[%s1 + $0x28] sm:$0xff]
    %v20 = vld [vmem:[%s1 + $0x30] sm:$0xff]
    %v21 = vld [vmem:[%s1 + $0x38] sm:$0xff]
    %v22 = vld [vmem:[%s1 + $0x40] sm:$0xff]
    %v23 = vld [vmem:[%s1 + $0x48] sm:$0xff]
    %v24 = vld [vmem:[%s1 + $0x50] sm:$0xff]
    %v25 = vld [vmem:[%s1 + $0x58] sm:$0xff]
    %v26 = vld [vmem:[%s1 + $0x60] sm:$0xff]
    %v27 = vld [vmem:[%s1 + $0x68] sm:$0xff]
    %v28 = vld [vmem:[%s1 + $0x70] sm:$0xff]
    %v29 = vld [vmem:[%s1 + $0x78] sm:$0xff]
    %30 = vmatpush.msra.mxu0 %v29
    %31 = vmatpush.msra.mxu0 %v28
    %32 = vmatpush.msra.mxu0 %v27
    %33 = vmatpush.msra.mxu0 %v26
    %34 = vmatpush.msra.mxu0 %v25
    %35 = vmatpush.msra.mxu0 %v24
    %36 = vmatpush.msra.mxu0 %v23
    %37 = vmatpush.msra.mxu0 %v22
    %38 = vmatpush.msra.mxu0 %v21
    %39 = vmatpush.msra.mxu0 %v20
    %40 = vmatpush.msra.mxu0 %v19
    %41 = vmatpush.msra.mxu0 %v18
    %42 = vmatpush.msra.mxu0 %v17
    %43 = vmatpush.msra.mxu0 %v16
    %44 = vmatpush.msra.mxu0 %v15
    %45 = vmatpush.msra.mxu0 %v14
    %46 = vmatmul.f32.gmra.mxu0 %v12
    %v47 = vpop.f32.mrf.mxu0
    %v48 = vadd.f32 0.0, %v47
    %49 = vmatmul.f32.gmra.mxu0 %v13
    %v50 = vpop.f32.mrf.mxu0
    %v51 = vadd.f32 0.0, %v50
    %52 = vdwg.mxu0
    %s53 = scalar_lea.vmem %s1, 128
    %v54 = vld [vmem:[%s53] sm:$0xff]
    %v55 = vld [vmem:[%s53 + $0x8] sm:$0xff]
    %v56 = vld [vmem:[%s53 + $0x10] sm:$0xff]
    %v57 = vld [vmem:[%s53 + $0x18] sm:$0xff]
    %v58 = vld [vmem:[%s53 + $0x20] sm:$0xff]
    %v59 = vld [vmem:[%s53 + $0x28] sm:$0xff]
    %v60 = vld [vmem:[%s53 + $0x30] sm:$0xff]
    %v61 = vld [vmem:[%s53 + $0x38] sm:$0xff]
    %v62 = vld [vmem:[%s53 + $0x40] sm:$0xff]
    %v63 = vld [vmem:[%s53 + $0x48] sm:$0xff]
    %v64 = vld [vmem:[%s53 + $0x50] sm:$0xff]
    %v65 = vld [vmem:[%s53 + $0x58] sm:$0xff]
    %v66 = vld [vmem:[%s53 + $0x60] sm:$0xff]
    %v67 = vld [vmem:[%s53 + $0x68] sm:$0xff]
    %v68 = vld [vmem:[%s53 + $0x70] sm:$0xff]
    %v69 = vld [vmem:[%s53 + $0x78] sm:$0xff]
    %70 = vmatpush.msra.mxu0 %v69
    %71 = vmatpush.msra.mxu0 %v68
    %72 = vmatpush.msra.mxu0 %v67
    %73 = vmatpush.msra.mxu0 %v66
    %74 = vmatpush.msra.mxu0 %v65
    %75 = vmatpush.msra.mxu0 %v64
    %76 = vmatpush.msra.mxu0 %v63
    %77 = vmatpush.msra.mxu0 %v62
    %78 = vmatpush.msra.mxu0 %v61
    %79 = vmatpush.msra.mxu0 %v60
    %80 = vmatpush.msra.mxu0 %v59
    %81 = vmatpush.msra.mxu0 %v58
    %82 = vmatpush.msra.mxu0 %v57
    %83 = vmatpush.msra.mxu0 %v56
    %84 = vmatpush.msra.mxu0 %v55
    %85 = vmatpush.msra.mxu0 %v54
    %86 = vmatmul.f32.gmra.mxu0 %v12
    %v87 = vpop.f32.mrf.mxu0
    %v88 = vadd.f32 0.0, %v87
    %89 = vmatmul.f32.gmra.mxu0 %v13
    %v90 = vpop.f32.mrf.mxu0
    %v91 = vadd.f32 0.0, %v90
    %92 = vdwg.mxu0
    %s93 = scalar_lea.vmem %s1, 256
    %v94 = vld [vmem:[%s93] sm:$0xff]
    %v95 = vld [vmem:[%s93 + $0x8] sm:$0xff]
    %v96 = vld [vmem:[%s93 + $0x10] sm:$0xff]
    %v97 = vld [vmem:[%s93 + $0x18] sm:$0xff]
    %v98 = vld [vmem:[%s93 + $0x20] sm:$0xff]
    %v99 = vld [vmem:[%s93 + $0x28] sm:$0xff]
    %v100 = vld [vmem:[%s93 + $0x30] sm:$0xff]
    %v101 = vld [vmem:[%s93 + $0x38] sm:$0xff]
    %v102 = vld [vmem:[%s93 + $0x40] sm:$0xff]
    %v103 = vld [vmem:[%s93 + $0x48] sm:$0xff]
    %v104 = vld [vmem:[%s93 + $0x50] sm:$0xff]
    %v105 = vld [vmem:[%s93 + $0x58] sm:$0xff]
    %v106 = vld [vmem:[%s93 + $0x60] sm:$0xff]
    %v107 = vld [vmem:[%s93 + $0x68] sm:$0xff]
    %v108 = vld [vmem:[%s93 + $0x70] sm:$0xff]
    %v109 = vld [vmem:[%s93 + $0x78] sm:$0xff]
    %110 = vmatpush.msra.mxu0 %v109
    %111 = vmatpush.msra.mxu0 %v108
    %112 = vmatpush.msra.mxu0 %v107
    %113 = vmatpush.msra.mxu0 %v106
    %114 = vmatpush.msra.mxu0 %v105
    %115 = vmatpush.msra.mxu0 %v104
    %116 = vmatpush.msra.mxu0 %v103
    %117 = vmatpush.msra.mxu0 %v102
    %118 = vmatpush.msra.mxu0 %v101
    %119 = vmatpush.msra.mxu0 %v100
    %120 = vmatpush.msra.mxu0 %v99
    %121 = vmatpush.msra.mxu0 %v98
    %122 = vmatpush.msra.mxu0 %v97
    %123 = vmatpush.msra.mxu0 %v96
    %124 = vmatpush.msra.mxu0 %v95
    %125 = vmatpush.msra.mxu0 %v94
    %126 = vmatmul.f32.gmra.mxu0 %v12
    %v127 = vpop.f32.mrf.mxu0
    %v128 = vadd.f32 0.0, %v127
    %129 = vmatmul.f32.gmra.mxu0 %v13
    %v130 = vpop.f32.mrf.mxu0
    %v131 = vadd.f32 0.0, %v130
    %132 = vdwg.mxu0
    %vm133 = vcmask 261120
    %v135 = vsel %vm133, %v48, 0
    %v138 = vsel %vm133, %v88, 0
    %140 = vmatpush.xpose.msra.mxu0 0.0
    %141 = vmatpush.xpose.msra.mxu0 0.0
    %142 = vmatpush.xpose.msra.mxu0 0.0
    %143 = vmatpush.xpose.msra.mxu0 0.0
    %144 = vmatpush.xpose.msra.mxu0 0.0
    %145 = vmatpush.xpose.msra.mxu0 0.0
    %146 = vmatpush.xpose.msra.mxu0 0.0
    %147 = vmatpush.xpose.msra.mxu0 0.0
    %148 = vmatpush.xpose.msra.mxu0 0.0
    %149 = vmatpush.xpose.msra.mxu0 0.0
    %150 = vmatpush.xpose.msra.mxu0 0.0
    %151 = vmatpush.xpose.msra.mxu0 0.0
    %152 = vmatpush.xpose.msra.mxu0 0.0
    %153 = vmatpush.xpose.msra.mxu0 0.0
    %154 = vmatpush.xpose.msra.mxu0 0.0
    %155 = vmatpush.xpose.msra.mxu0 %v138
    %156 = vmatmul.f32.gmra.mxu0 %v135
    %v157 = vpop.f32.mrf.mxu0
    %v158 = vadd.f32 0.0, %v157
    %159 = vdwg.mxu0
    %v161 = vsel %vm133, %v51, 0
    %v164 = vsel %vm133, %v91, 0
    %166 = vmatpush.xpose.msra.mxu0 0.0
    %167 = vmatpush.xpose.msra.mxu0 0.0
    %168 = vmatpush.xpose.msra.mxu0 0.0
    %169 = vmatpush.xpose.msra.mxu0 0.0
    %170 = vmatpush.xpose.msra.mxu0 0.0
    %171 = vmatpush.xpose.msra.mxu0 0.0
    %172 = vmatpush.xpose.msra.mxu0 0.0
    %173 = vmatpush.xpose.msra.mxu0 0.0
    %174 = vmatpush.xpose.msra.mxu0 0.0
    %175 = vmatpush.xpose.msra.mxu0 0.0
    %176 = vmatpush.xpose.msra.mxu0 0.0
    %177 = vmatpush.xpose.msra.mxu0 0.0
    %178 = vmatpush.xpose.msra.mxu0 0.0
    %179 = vmatpush.xpose.msra.mxu0 0.0
    %180 = vmatpush.xpose.msra.mxu0 0.0
    %181 = vmatpush.xpose.msra.mxu0 %v164
    %182 = vmatmul.f32.gmra.mxu0 %v161
    %v183 = vpop.f32.mrf.mxu0
    %v184 = vadd.f32 0.0, %v183
    %185 = vdwg.mxu0
    %v186 = vmul.f32 %v158, 0.088388346
    %v187 = vmul.f32 %v184, 0.088388346
    %v188 = vlaneseq
    %v189 = vshrl.u32 %v188, 7
    %v190 = vlaneseq
    %v191 = vand.u32 %v190, 127
    %vm192 = vcmp.le.s32.totalorder %v191, %v189
    %v193 = vsel %vm192, %v186, -3.4028235e+38
    %v194 = vsel %vm192, %v187, -3.4028235e+38
    %vm195 = vcmask 64512
    %v196 = vsel %vm195, %v193, -inf
    %197 = vmax.xlane.f32.xlu0 %v196
    %v198 = vpop.xlane.xlu0 %197
    %v199 = vsel %vm195, %v194, -inf
    %200 = vmax.xlane.f32.xlu0 %v199
    %v201 = vpop.xlane.xlu0 %200
    %v202 = vsub.f32 %v193, %v198
    %v203 = vsub.f32 %v194, %v201
    %v204 = vmul.f32 %v202, 1.442695
    %v205 = vpow.pop %v204
    %v206 = vmul.f32 %v203, 1.442695
    %v207 = vpow.pop %v206
    %v208 = vsel %vm195, %v205, 0.0
    %209 = vadd.xlane.f32.xlu0 %v208
    %v210 = vpop.xlane.xlu0 %209
    %v211 = vsel %vm195, %v207, 0.0
    %212 = vadd.xlane.f32.xlu0 %v211
    %v213 = vpop.xlane.xlu0 %212
    %v214 = vrcp.pop %v210
    %v215 = vmul.f32 %v210, %v214
    %v216 = vsub.f32 1.0, %v215
    %v217 = vmul.f32 %v214, %v216
    %v218 = vadd.f32 %v214, %v217
    %vm219 = vweird.f32 %v210
    %vm220 = vweird.f32 %v214
    %vm221 = vmor %vm219, %vm220
    %v222 = vsel %vm221, %v214, %v218
    %v223 = vand.u32 2147483647, %v210
    %vm224 = vcmp.eq.f32.partialorder %v223, 8.507059e+37
    %v225 = vand.u32 %v210, 2147483648
    %v226 = vor.u32 1.1754944e-38, %v225
    %v227 = vsel %vm224, %v226, %v222
    %v228 = vmul.f32 %v205, %v227
    %v229 = vrcp.pop %v213
    %v230 = vmul.f32 %v213, %v229
    %v231 = vsub.f32 1.0, %v230
    %v232 = vmul.f32 %v229, %v231
    %v233 = vadd.f32 %v229, %v232
    %vm234 = vweird.f32 %v213
    %vm235 = vweird.f32 %v229
    %vm236 = vmor %vm234, %vm235
    %v237 = vsel %vm236, %v229, %v233
    %v238 = vand.u32 2147483647, %v213
    %vm239 = vcmp.eq.f32.partialorder %v238, 8.507059e+37
    %v240 = vand.u32 %v213, 2147483648
    %v241 = vor.u32 1.1754944e-38, %v240
    %v242 = vsel %vm239, %v241, %v237
    %v243 = vmul.f32 %v207, %v242
    %v245 = vsel %vm195, %v228, 0
    %247 = vmatpush.msra.mxu0 0.0
    %248 = vmatpush.msra.mxu0 0.0
    %249 = vmatpush.msra.mxu0 0.0
    %250 = vmatpush.msra.mxu0 0.0
    %251 = vmatpush.msra.mxu0 0.0
    %252 = vmatpush.msra.mxu0 0.0
    %253 = vmatpush.msra.mxu0 0.0
    %254 = vmatpush.msra.mxu0 0.0
    %255 = vmatpush.msra.mxu0 0.0
    %256 = vmatpush.msra.mxu0 0.0
    %257 = vmatpush.msra.mxu0 0.0
    %258 = vmatpush.msra.mxu0 0.0
    %259 = vmatpush.msra.mxu0 0.0
    %260 = vmatpush.msra.mxu0 0.0
    %261 = vmatpush.msra.mxu0 0.0
    %262 = vmatpush.msra.mxu0 %v128
    %263 = vmatmul.f32.gmra.mxu0 %v245
    %v264 = vpop.f32.mrf.mxu0
    %v265 = vadd.f32 0.0, %v264
    %266 = vdwg.mxu0
    %v268 = vsel %vm195, %v243, 0
    %270 = vmatpush.msra.mxu0 0.0
    %271 = vmatpush.msra.mxu0 0.0
    %272 = vmatpush.msra.mxu0 0.0
    %273 = vmatpush.msra.mxu0 0.0
    %274 = vmatpush.msra.mxu0 0.0
    %275 = vmatpush.msra.mxu0 0.0
    %276 = vmatpush.msra.mxu0 0.0
    %277 = vmatpush.msra.mxu0 0.0
    %278 = vmatpush.msra.mxu0 0.0
    %279 = vmatpush.msra.mxu0 0.0
    %280 = vmatpush.msra.mxu0 0.0
    %281 = vmatpush.msra.mxu0 0.0
    %282 = vmatpush.msra.mxu0 0.0
    %283 = vmatpush.msra.mxu0 0.0
    %284 = vmatpush.msra.mxu0 0.0
    %285 = vmatpush.msra.mxu0 %v131
    %286 = vmatmul.f32.gmra.mxu0 %v268
    %v287 = vpop.f32.mrf.mxu0
    %v288 = vadd.f32 0.0, %v287
    %289 = vdwg.mxu0
    %vm292 = vcmask 1044484
    %v293 = vsel %vm292, %v265, %v265
    %vm294 = vcmask 1046534
    %v295 = vsel %vm294, %v265, %v293
    %v296 = vrot.slane %v288, 7
    %vm297 = vcmask 1041409
    %v298 = vsel %vm297, %v296, %v295
    %vm299 = vcmask 1043459
    %v300 = vsel %vm299, %v296, %v298
    %vm301 = vcmask 1045509
    %v302 = vsel %vm301, %v296, %v300
    %vm303 = vcmask 1047559
    %v304 = vsel %vm303, %v296, %v302
    %vm306 = vcmask 254976
    %307 = vst.msk [vmem:[#allocation2] sm:$0x3] %vm306, %v304
    %v308 = vrot.slane %v265, 1
    %v309 = vsel %vm292, %v308, %v308
    %v310 = vsel %vm294, %v308, %v309
    %v311 = vsel %vm297, %v288, %v310
    %v312 = vsel %vm299, %v288, %v311
    %v313 = vsel %vm301, %v288, %v312
    %v314 = vsel %vm303, %v288, %v313
    %315 = vrot.lane.b32.xlu0 %v314, 32
    %v316 = vpop.permute.xlu0 %315
    %vm318 = vcmask 517376
    %319 = vst.msk [vmem:[#allocation2] sm:$0x3] %vm318, %v316
    %320 = vst.sshfl [vmem:[#allocation1] sm:$0xff pattern:$0x73625140] %v265
    %s321 = scalar_lea.vmem [#allocation1], 1
    %v322 = vld [vmem:[%s321] ss:$4 sm:$0xff]
    %323 = vst.sshfl [vmem:[#allocation1 + $0x20] sm:$0xff pattern:$0x73625140] %v288
    %s324 = scalar_lea.vmem [#allocation1], 33
    %v325 = vld [vmem:[%s324] ss:$4 sm:$0xff]
    %v326 = vsel %vm292, %v322, %v322
    %v327 = vsel %vm294, %v322, %v326
    %v328 = vrot.slane %v325, 7
    %v329 = vsel %vm297, %v328, %v327
    %v330 = vsel %vm299, %v328, %v329
    %v331 = vsel %vm301, %v328, %v330
    %v332 = vsel %vm303, %v328, %v331
    %333 = vrot.lane.b32.xlu0 %v332, 64
    %v334 = vpop.permute.xlu0 %333
    %vm336 = vcmask 779776
    %337 = vst.msk [vmem:[#allocation2] sm:$0x3] %vm336, %v334
    %338 = vst.sshfl [vmem:[#allocation1] sm:$0xff pattern:$0x73625140] %v265
    %s339 = scalar_lea.vmem [#allocation1], 1
    %v340 = vld [vmem:[%s339] ss:$4 sm:$0xff]
    %341 = vst.sshfl [vmem:[#allocation1 + $0x20] sm:$0xff pattern:$0x73625140] %v288
    %s342 = scalar_lea.vmem [#allocation1], 33
    %v343 = vld [vmem:[%s342] ss:$4 sm:$0xff]
    %v344 = vrot.slane %v340, 1
    %v345 = vsel %vm292, %v344, %v344
    %v346 = vsel %vm294, %v344, %v345
    %v347 = vsel %vm297, %v343, %v346
    %v348 = vsel %vm299, %v343, %v347
    %v349 = vsel %vm301, %v343, %v348
    %v350 = vsel %vm303, %v343, %v349
    %351 = vrot.lane.b32.xlu0 %v350, 96
    %v352 = vpop.permute.xlu0 %351
    %vm354 = vcmask 1042176
    %355 = vst.msk [vmem:[#allocation2] sm:$0x3] %vm354, %v352
    %356 = vst.sshfl [vmem:[#allocation1] sm:$0xff pattern:$0x73625140] %v265
    %s357 = scalar_lea.vmem [#allocation1], 2
    %v358 = vld [vmem:[%s357] ss:$4 sm:$0xff]
    %359 = vst.sshfl [vmem:[#allocation1 + $0x20] sm:$0xff pattern:$0x73625140] %v288
    %s360 = scalar_lea.vmem [#allocation1], 34
    %v361 = vld [vmem:[%s360] ss:$4 sm:$0xff]
    %v362 = vsel %vm292, %v358, %v358
    %v363 = vsel %vm294, %v358, %v362
    %v364 = vrot.slane %v361, 7
    %v365 = vsel %vm297, %v364, %v363
    %v366 = vsel %vm299, %v364, %v365
    %v367 = vsel %vm301, %v364, %v366
    %v368 = vsel %vm303, %v364, %v367
    %370 = vst.msk [vmem:[#allocation2 + $0x2] sm:$0x3] %vm306, %v368
    %371 = vst.sshfl [vmem:[#allocation1] sm:$0xff pattern:$0x73625140] %v265
    %s372 = scalar_lea.vmem [#allocation1], 2
    %v373 = vld [vmem:[%s372] ss:$4 sm:$0xff]
    %374 = vst.sshfl [vmem:[#allocation1 + $0x20] sm:$0xff pattern:$0x73625140] %v288
    %s375 = scalar_lea.vmem [#allocation1], 34
    %v376 = vld [vmem:[%s375] ss:$4 sm:$0xff]
    %v377 = vrot.slane %v373, 1
    %v378 = vsel %vm292, %v377, %v377
    %v379 = vsel %vm294, %v377, %v378
    %v380 = vsel %vm297, %v376, %v379
    %v381 = vsel %vm299, %v376, %v380
    %v382 = vsel %vm301, %v376, %v381
    %v383 = vsel %vm303, %v376, %v382
    %384 = vrot.lane.b32.xlu0 %v383, 32
    %v385 = vpop.permute.xlu0 %384
    %387 = vst.msk [vmem:[#allocation2 + $0x2] sm:$0x3] %vm318, %v385
    %388 = vst.sshfl [vmem:[#allocation1] sm:$0xff pattern:$0x73625140] %v265
    %s389 = scalar_lea.vmem [#allocation1], 3
    %v390 = vld [vmem:[%s389] ss:$4 sm:$0xff]
    %391 = vst.sshfl [vmem:[#allocation1 + $0x20] sm:$0xff pattern:$0x73625140] %v288
    %s392 = scalar_lea.vmem [#allocation1], 35
    %v393 = vld [vmem:[%s392] ss:$4 sm:$0xff]
    %v394 = vsel %vm292, %v390, %v390
    %v395 = vsel %vm294, %v390, %v394
    %v396 = vrot.slane %v393, 7
    %v397 = vsel %vm297, %v396, %v395
    %v398 = vsel %vm299, %v396, %v397
    %v399 = vsel %vm301, %v396, %v398
    %v400 = vsel %vm303, %v396, %v399
    %401 = vrot.lane.b32.xlu0 %v400, 64
    %v402 = vpop.permute.xlu0 %401
    %404 = vst.msk [vmem:[#allocation2 + $0x2] sm:$0x3] %vm336, %v402
    %405 = vst.sshfl [vmem:[#allocation1] sm:$0xff pattern:$0x73625140] %v265
    %s406 = scalar_lea.vmem [#allocation1], 3
    %v407 = vld [vmem:[%s406] ss:$4 sm:$0xff]
    %408 = vst.sshfl [vmem:[#allocation1 + $0x20] sm:$0xff pattern:$0x73625140] %v288
    %s409 = scalar_lea.vmem [#allocation1], 35
    %v410 = vld [vmem:[%s409] ss:$4 sm:$0xff]
    %v411 = vrot.slane %v407, 1
    %v412 = vsel %vm292, %v411, %v411
    %v413 = vsel %vm294, %v411, %v412
    %v414 = vsel %vm297, %v410, %v413
    %v415 = vsel %vm299, %v410, %v414
    %v416 = vsel %vm301, %v410, %v415
    %v417 = vsel %vm303, %v410, %v416
    %418 = vrot.lane.b32.xlu0 %v417, 96
    %v419 = vpop.permute.xlu0 %418
    %421 = vst.msk [vmem:[#allocation2 + $0x2] sm:$0x3] %vm354, %v419
    // Predicated region
    $region10: #{tpu_custom_call.1} parent=1 // pred_check
      _
    $region11: #{tpu_custom_call.1} parent=1 // pred_check_branch
      %423 = sbr.rel (0) target = $region13
    $region12: #{tpu_custom_call.1} parent=1 // pred_region
      %425 = vsyncadd [#allocation3], 0
      %s427 = sshll.u32 [#allocation2], 4
      %s428 = int_to_ptr.vmem [resolvable:$true] %s427
      %s429 = sshll.u32 %s2, 4
      %s430 = int_to_ptr.hbm [resolvable:$true] %s429
      %432 = dma.vmem_to_hbm [thread:$0]  %s428, 64, %s430, [#allocation3]
    $region13: #{tpu_custom_call.1} parent=1 // pred_fallthru
      _
    // Predicated region
    $region14: #{tpu_custom_call.1} parent=1 // pred_check
      _
    $region15: #{tpu_custom_call.1} parent=1 // pred_check_branch
      %434 = sbr.rel (0) target = $region17
    $region16: #{tpu_custom_call.1} parent=1 // pred_region
      %436 = dma.done [#allocation3], 64
    $region17: #{tpu_custom_call.1} parent=1 // pred_fallthru
      _
    %437 = vsyncpa [#allocation3], 1

</llo_original>
